<compile_context>
chip_gen: v6e
topology: v6e:2x2x1
jax: 0.10.0
libtpu: 0.0.40
codegen_flags: <defaults>
</compile_context>

<pallas_src>
import jax
import jax.numpy as jnp
from jax.experimental import pallas as pl
from jax.experimental.pallas import tpu as pltpu

NEG_INF_BIAS = -1e30  # pad-column bias so padded classes never contribute to softmax


def _round_up(n, m):
    return ((n + m - 1) // m) * m


def prepare_classifier_params(w, b):
    """torch nn.Linear layout (C, D) weight / (C,) bias ->
       lane-padded, pre-transposed (D, Cpad) bf16 weight and (1, Cpad) f32 bias.
       Done once outside the hot path."""
    C, D = w.shape
    c_pad = _round_up(C, 128)
    w_t = jnp.zeros((D, c_pad), jnp.bfloat16).at[:, :C].set(w.T.astype(jnp.bfloat16))
    b_p = jnp.full((1, c_pad), NEG_INF_BIAS, jnp.float32).at[0, :C].set(
        b.astype(jnp.float32))
    return w_t, b_p


# ----------------------------------------------------------------------------
# Fused trainstep kernel (packed I/O):
#   inputs : mulv_img (B,2L)=[mu_i|lv_i], mulv_att (B,2L)=[mu_a|lv_a], eps (B,2)
#   z      : [z_img | z_att]  (B, 2L)      z_m = mu_m + exp(lv_m) * eps_m
#   KLD    : 0.5*sum(1+lv_a-mu_a^2-exp(lv_a)) + 0.5*sum(1+lv_i-mu_i^2-exp(lv_i))
#   dist   : sum_b sqrt( sum_d (mu_i-mu_a)^2 + sum_d (sqrt(exp(lv_i))-sqrt(exp(lv_a)))^2 )
#   logp   : log_softmax(z_img @ W^T + b)   (classifier that consumes z_img)
# ----------------------------------------------------------------------------
def cada_fused_kernel(ml_i_ref, ml_a_ref, eps_ref, w_ref, b_ref,
                      z_ref, logp_ref, stats_ref):
    L = ml_i_ref.shape[1] // 2
    ml_i = ml_i_ref[...]
    ml_a = ml_a_ref[...]
    mu_i, lv_i = ml_i[:, :L], ml_i[:, L:]
    mu_a, lv_a = ml_a[:, :L], ml_a[:, L:]
    eps = eps_ref[...]
    eps_i = eps[:, 0:1]
    eps_a = eps[:, 1:2]

    # one EUP exp per modality; sigma_half = exp(0.5*lv), exp(lv) = sigma_half^2
    s_i = jnp.exp(0.5 * lv_i)
    s_a = jnp.exp(0.5 * lv_a)
    e_i = s_i * s_i            # == exp(lv_i)
    e_a = s_a * s_a            # == exp(lv_a)

    # reparameterize (faithful to source: sigma = exp(logvar), eps (B,1) broadcast)
    z_i = mu_i + e_i * eps_i
    z_a = mu_a + e_a * eps_a
    # single lane-dense (B, 2L) slab: lanes [0,L) = z_img, lanes [L,2L) = z_att
    z_ref[...] = jnp.concatenate([z_i, z_a], axis=1)

    # KLD (reuses e_i / e_a)
    kld = (0.5 * jnp.sum(1.0 + lv_a - mu_a * mu_a - e_a)
           + 0.5 * jnp.sum(1.0 + lv_i - mu_i * mu_i - e_i))

    # Wasserstein-style distance; sqrt(exp(lv)) == exp(0.5*lv) (cheaper, no overflow)
    sq_mu = jnp.sum((mu_i - mu_a) ** 2, axis=1, keepdims=True)
    sq_sig = jnp.sum((s_i - s_a) ** 2, axis=1, keepdims=True)
    dist = jnp.sum(jnp.sqrt(sq_mu + sq_sig))

    # pack both scalars into one lane-dense row: lane0 = KLD, lane1 = dist
    lane = jax.lax.broadcasted_iota(jnp.int32, (1, 128), 1)
    stats_ref[...] = jnp.where(lane == 0, kld, jnp.where(lane == 1, dist, 0.0))

    # classifier on z_img: bf16 MXU matmul, f32 accumulation + softmax math
    logits = jnp.dot(z_i.astype(jnp.bfloat16), w_ref[...],
                     preferred_element_type=jnp.float32) + b_ref[...]
    m = jnp.max(logits, axis=1, keepdims=True)
    shifted = logits - m
    lse = jnp.log(jnp.sum(jnp.exp(shifted), axis=1, keepdims=True))
    logp_ref[...] = shifted - lse


def cada_trainstep_fused(mulv_img, mulv_att, eps, w_t_pad, b_pad):
    """Returns (z_packed (B,2L), logp_padded (B,Cpad), stats (1,128)).

    Outputs are returned raw (no slicing) so callers can consume them inside
    their own jit; stats lane 0 = KLD, lane 1 = distance; only the first
    nclass columns of logp are valid (padded columns are ~ -1e30)."""
    B, L2 = mulv_img.shape
    c_pad = w_t_pad.shape[1]
    # Single-block launch: trainstep batches are tiny (everything fits in VMEM).
    # TODO(synk): when realistic training batches are used, add a 'parallel'
    #             batch grid axis (row blocks of 128-256, constant index_maps
    #             for w/b) so both v7x TensorCores are busy and input DMAs
    #             pipeline; stats then need a per-block partial-sum output.
    return pl.pallas_call(
        cada_fused_kernel,
        out_shape=(
            jax.ShapeDtypeStruct((B, L2), jnp.float32),     # [z_img | z_att]
            jax.ShapeDtypeStruct((B, c_pad), jnp.float32),  # padded log_softmax(z_img)
            jax.ShapeDtypeStruct((1, 128), jnp.float32),    # lane0 KLD, lane1 dist
        ),
    )(mulv_img, mulv_att, eps, w_t_pad, b_pad)


# ----------------------------------------------------------------------------
# Standalone LINEAR_LOGSOFTMAX forward (used by the classifier on arbitrary x)
# ----------------------------------------------------------------------------
def linear_logsoftmax_kernel(x_ref, w_ref, b_ref, o_ref):
    logits = jnp.dot(x_ref[...].astype(jnp.bfloat16), w_ref[...],
                     preferred_element_type=jnp.float32) + b_ref[...]
    m = jnp.max(logits, axis=1, keepdims=True)
    shifted = logits - m
    lse = jnp.log(jnp.sum(jnp.exp(shifted), axis=1, keepdims=True))
    o_ref[...] = (shifted - lse).astype(o_ref.dtype)


def linear_logsoftmax(x, w_t_pad, b_pad, *, block_b=1024, out_dtype=jnp.float32):
    """Returns the (B, Cpad) padded log-softmax output (no wrapper slice; the
    padded columns are ~ -1e30, so argmax/NLL gathers over the real classes are
    unaffected). Pass x in bf16 to halve input HBM traffic; set
    out_dtype=jnp.bfloat16 if the downstream loss tolerates it."""
    B, D = x.shape
    c_pad = w_t_pad.shape[1]
    if B <= 256:
        bb = B                      # tiny batch: single block, latency-bound
    else:
        # big row tiles for HBM-roofline efficiency, but keep >=2 grid steps so
        # both v7x TensorCores get work (v5e/v6e: just bigger tiles).
        bb = min(block_b, _round_up(pl.cdiv(B, 2), 256))
    grid = (pl.cdiv(B, bb),)

    # double-buffered x & out tiles + resident weight/bias
    out_isz = jnp.dtype(out_dtype).itemsize
    vmem_est = (2 * (bb * D * x.dtype.itemsize + bb * c_pad * out_isz)
                + D * c_pad * 2 + c_pad * 4)
    cp_kwargs = dict(dimension_semantics=("parallel",))
    if vmem_est > 24 * 1024 * 1024:
        # only needed for very large experimental tiles; default tiles fit the
        # scoped default on all generations.
        cp_kwargs["vmem_limit_bytes"] = min(vmem_est + (8 << 20), 48 << 20)

    return pl.pallas_call(
        linear_logsoftmax_kernel,
        out_shape=jax.ShapeDtypeStruct((B, c_pad), out_dtype),
        grid=grid,
        in_specs=[
            pl.BlockSpec((bb, D), lambda i: (i, 0)),
            pl.BlockSpec((D, c_pad), lambda i: (0, 0)),   # weight stays VMEM-resident
            pl.BlockSpec((1, c_pad), lambda i: (0, 0)),
        ],
        out_specs=pl.BlockSpec((bb, c_pad), lambda i: (i, 0)),
        compiler_params=pltpu.CompilerParams(**cp_kwargs),
    )(x, w_t_pad, b_pad)


# ----------------------------------------------------------------------------
# Plain-JAX references (sanity checks only)
# ----------------------------------------------------------------------------
def reparameterize_ref(mu, logvar, eps):
    return mu + jnp.exp(logvar) * eps


def vae_stats_ref(mu_i, lv_i, mu_a, lv_a):
    kld = (0.5 * jnp.sum(1 + lv_a - mu_a ** 2 - jnp.exp(lv_a))
           + 0.5 * jnp.sum(1 + lv_i - mu_i ** 2 - jnp.exp(lv_i)))
    d = jnp.sqrt(jnp.sum((mu_i - mu_a) ** 2, axis=1)
                 + jnp.sum((jnp.sqrt(jnp.exp(lv_i)) - jnp.sqrt(jnp.exp(lv_a))) ** 2,
                           axis=1))
    return kld, jnp.sum(d)


def linear_logsoftmax_ref(x, w, b):
    # same bf16-operand / f32-accumulation contraction as the kernel
    logits = jnp.dot(x.astype(jnp.bfloat16), w.T.astype(jnp.bfloat16),
                     preferred_element_type=jnp.float32) + b
    return jax.nn.log_softmax(logits, axis=1)


if __name__ == "__main__":
    # Shapes consistent with the module: latent_size=64, CUB -> 200 classes.
    B = 8            # trainstep batch
    LATENT = 64      # hyperparameters['latent_size']
    NCLASS = 200     # CUB num_classes
    B_EVAL = 384     # eval-path batch (exercises the 2-step parallel grid)

    key = jax.random.PRNGKey(0)
    kx, kw, kb, kmi, kli, kma, kla, ke = jax.random.split(key, 8)

    # LINEAR_LOGSOFTMAX parameters in torch layout (out, in), padded/cast once.
    w = jax.random.normal(kw, (NCLASS, LATENT), jnp.float32) * 0.05
    b = jax.random.normal(kb, (NCLASS,), jnp.float32) * 0.05
    w_t_pad, b_pad = prepare_classifier_params(w, b)

    # Latent-space inputs (stand-ins for encoder outputs)
    mu_img = jax.random.normal(kmi, (B, LATENT), jnp.float32)
    logvar_img = 0.1 * jax.random.normal(kli, (B, LATENT), jnp.float32)
    mu_att = jax.random.normal(kma, (B, LATENT), jnp.float32)
    logvar_att = 0.1 * jax.random.normal(kla, (B, LATENT), jnp.float32)
    eps = jax.random.normal(ke, (B, 2), jnp.float32)   # col 0 = eps_img, col 1 = eps_att

    # Packed (B, 2L) [mu | logvar] slabs per modality — stand-in for encoders
    # that emit packed latents (this is input construction, not a hot-path
    # wrapper concat).
    mulv_img = jnp.concatenate([mu_img, logvar_img], axis=1)
    mulv_att = jnp.concatenate([mu_att, logvar_att], axis=1)

    # Fused trainstep path: reparameterize (both modalities) + KLD + distance
    # + classifier log-softmax on z_img, all in one pallas_call (5 in / 3 out DMAs).
    z_pack, logp_pad, stats = jax.block_until_ready(
        cada_trainstep_fused(mulv_img, mulv_att, eps, w_t_pad, b_pad))

    # Standalone LINEAR_LOGSOFTMAX.forward on an arbitrary latent input.
    # bf16 input halves HBM read traffic; output stays padded (no wrapper slice).
    x_eval = jax.random.normal(kx, (B_EVAL, LATENT), jnp.float32).astype(jnp.bfloat16)
    logp_x_pad = jax.block_until_ready(linear_logsoftmax(x_eval, w_t_pad, b_pad))

    # ---- sanity checks (verification only; slicing here is not the hot path) ----
    z_img, z_att = z_pack[:, :LATENT], z_pack[:, LATENT:]
    kld, dist = stats[0, 0], stats[0, 1]
    logp_z = logp_pad[:, :NCLASS]
    logp_x = logp_x_pad[:, :NCLASS]

    z_img_ref = reparameterize_ref(mu_img, logvar_img, eps[:, 0:1])
    z_att_ref = reparameterize_ref(mu_att, logvar_att, eps[:, 1:2])
    kld_ref, dist_ref = vae_stats_ref(mu_img, logvar_img, mu_att, logvar_att)
    logp_z_ref = linear_logsoftmax_ref(z_img_ref, w, b)
    logp_x_ref = linear_logsoftmax_ref(x_eval, w, b)

    assert jnp.allclose(z_img, z_img_ref, atol=1e-5), "reparameterize (img) mismatch"
    assert jnp.allclose(z_att, z_att_ref, atol=1e-5), "reparameterize (att) mismatch"
    assert jnp.allclose(kld, kld_ref, atol=1e-3, rtol=1e-4), "KLD mismatch"
    assert jnp.allclose(dist, dist_ref, atol=1e-3, rtol=1e-4), "distance mismatch"
    assert jnp.allclose(logp_z, logp_z_ref, atol=5e-3, rtol=1e-3), "fused log_softmax mismatch"
    assert jnp.allclose(logp_x, logp_x_ref, atol=5e-3, rtol=1e-3), "classifier log_softmax mismatch"

    print("KERNEL_OK")
</pallas_src>

<mosaic_0001>
module attributes {stable_mosaic.version = 11 : i64} {
  func.func @cada_fused_kernel(%arg0: memref<8x128xf32, #tpu.memory_space<vmem>>, %arg1: memref<8x128xf32, #tpu.memory_space<vmem>>, %arg2: memref<8x2xf32, #tpu.memory_space<vmem>>, %arg3: memref<64x256xbf16, #tpu.memory_space<vmem>>, %arg4: memref<1x256xf32, #tpu.memory_space<vmem>>, %arg5: memref<8x128xf32, #tpu.memory_space<vmem>>, %arg6: memref<8x256xf32, #tpu.memory_space<vmem>>, %arg7: memref<1x128xf32, #tpu.memory_space<vmem>>) attributes {dimension_semantics = [], scalar_prefetch = 0 : i64, scratch_operands = 0 : i64, tpu.core_type = #tpu.core_type<tc>} {
    %c0 = arith.constant 0 : index
    %c0_0 = arith.constant 0 : index
    %0 = vector.load %arg0[%c0, %c0_0] : memref<8x128xf32, #tpu.memory_space<vmem>>, vector<8x128xf32>
    %c0_1 = arith.constant 0 : index
    %c0_2 = arith.constant 0 : index
    %1 = vector.load %arg1[%c0_1, %c0_2] : memref<8x128xf32, #tpu.memory_space<vmem>>, vector<8x128xf32>
    %2 = vector.extract_strided_slice %0 {offsets = [0, 0], sizes = [8, 64], strides = [1, 1]} : vector<8x128xf32> to vector<8x64xf32>
    %3 = vector.extract_strided_slice %0 {offsets = [0, 64], sizes = [8, 64], strides = [1, 1]} : vector<8x128xf32> to vector<8x64xf32>
    %4 = vector.extract_strided_slice %1 {offsets = [0, 0], sizes = [8, 64], strides = [1, 1]} : vector<8x128xf32> to vector<8x64xf32>
    %5 = vector.extract_strided_slice %1 {offsets = [0, 64], sizes = [8, 64], strides = [1, 1]} : vector<8x128xf32> to vector<8x64xf32>
    %c0_3 = arith.constant 0 : index
    %c0_4 = arith.constant 0 : index
    %6 = vector.load %arg2[%c0_3, %c0_4] : memref<8x2xf32, #tpu.memory_space<vmem>>, vector<8x2xf32>
    %7 = vector.extract_strided_slice %6 {offsets = [0, 0], sizes = [8, 1], strides = [1, 1]} : vector<8x2xf32> to vector<8x1xf32>
    %8 = vector.extract_strided_slice %6 {offsets = [0, 1], sizes = [8, 1], strides = [1, 1]} : vector<8x2xf32> to vector<8x1xf32>
    %cst = arith.constant 5.000000e-01 : f32
    %9 = vector.broadcast %cst : f32 to vector<8x64xf32>
    %10 = arith.mulf %9, %3 : vector<8x64xf32>
    %11 = math.exp %10 : vector<8x64xf32>
    %cst_5 = arith.constant 5.000000e-01 : f32
    %12 = vector.broadcast %cst_5 : f32 to vector<8x64xf32>
    %13 = arith.mulf %12, %5 : vector<8x64xf32>
    %14 = math.exp %13 : vector<8x64xf32>
    %15 = arith.mulf %11, %11 : vector<8x64xf32>
    %16 = arith.mulf %14, %14 : vector<8x64xf32>
    %17 = vector.broadcast %7 : vector<8x1xf32> to vector<8x64xf32>
    %18 = arith.mulf %15, %17 : vector<8x64xf32>
    %19 = arith.addf %2, %18 : vector<8x64xf32>
    %20 = vector.broadcast %8 : vector<8x1xf32> to vector<8x64xf32>
    %21 = arith.mulf %16, %20 : vector<8x64xf32>
    %22 = arith.addf %4, %21 : vector<8x64xf32>
    %23 = tpu.concatenate %19, %22 in 1 : vector<8x64xf32>, vector<8x64xf32> -> vector<8x128xf32>
    %c0_6 = arith.constant 0 : index
    %c0_7 = arith.constant 0 : index
    %24 = vector.load %arg5[%c0_6, %c0_7] : memref<8x128xf32, #tpu.memory_space<vmem>>, vector<8x128xf32>
    tpu.vector_store %arg5[%c0_6, %c0_7], %23 {strides = array<i32>} : memref<8x128xf32, #tpu.memory_space<vmem>>, vector<8x128xf32>,
    %cst_8 = arith.constant 1.000000e+00 : f32
    %25 = vector.broadcast %cst_8 : f32 to vector<8x64xf32>
    %26 = arith.addf %25, %5 : vector<8x64xf32>
    %27 = arith.mulf %4, %4 : vector<8x64xf32>
    %28 = arith.subf %26, %27 : vector<8x64xf32>
    %29 = arith.subf %28, %16 : vector<8x64xf32>
    %30 = vector.shape_cast %29 : vector<8x64xf32> to vector<1x8x64xf32>
    %cst_9 = arith.constant dense<0.000000e+00> : vector<1xf32>
    %31 = vector.multi_reduction <add>, %30, %cst_9 [1, 2] : vector<1x8x64xf32> to vector<1xf32>
    %32 = vector.shape_cast %31 : vector<1xf32> to vector<1x1x1xf32>
    %33 = vector.extract %32[0, 0, 0] : f32 from vector<1x1x1xf32>
    %cst_10 = arith.constant 5.000000e-01 : f32
    %34 = arith.mulf %cst_10, %33 : f32
    %cst_11 = arith.constant 1.000000e+00 : f32
    %35 = vector.broadcast %cst_11 : f32 to vector<8x64xf32>
    %36 = arith.addf %35, %3 : vector<8x64xf32>
    %37 = arith.mulf %2, %2 : vector<8x64xf32>
    %38 = arith.subf %36, %37 : vector<8x64xf32>
    %39 = arith.subf %38, %15 : vector<8x64xf32>
    %40 = vector.shape_cast %39 : vector<8x64xf32> to vector<1x8x64xf32>
    %cst_12 = arith.constant dense<0.000000e+00> : vector<1xf32>
    %41 = vector.multi_reduction <add>, %40, %cst_12 [1, 2] : vector<1x8x64xf32> to vector<1xf32>
    %42 = vector.shape_cast %41 : vector<1xf32> to vector<1x1x1xf32>
    %43 = vector.extract %42[0, 0, 0] : f32 from vector<1x1x1xf32>
    %cst_13 = arith.constant 5.000000e-01 : f32
    %44 = arith.mulf %cst_13, %43 : f32
    %45 = arith.addf %34, %44 : f32
    %46 = arith.subf %2, %4 : vector<8x64xf32>
    %47 = arith.mulf %46, %46 : vector<8x64xf32>
    %cst_14 = arith.constant dense<0.000000e+00> : vector<8xf32>
    %48 = vector.multi_reduction <add>, %47, %cst_14 [1] : vector<8x64xf32> to vector<8xf32>
    %49 = vector.shape_cast %48 : vector<8xf32> to vector<8x1xf32>
    %50 = arith.subf %11, %14 : vector<8x64xf32>
    %51 = arith.mulf %50, %50 : vector<8x64xf32>
    %cst_15 = arith.constant dense<0.000000e+00> : vector<8xf32>
    %52 = vector.multi_reduction <add>, %51, %cst_15 [1] : vector<8x64xf32> to vector<8xf32>
    %53 = vector.shape_cast %52 : vector<8xf32> to vector<8x1xf32>
    %54 = arith.addf %49, %53 : vector<8x1xf32>
    %55 = math.sqrt %54 : vector<8x1xf32>
    %56 = vector.shape_cast %55 : vector<8x1xf32> to vector<1x8x1xf32>
    %cst_16 = arith.constant dense<0.000000e+00> : vector<1xf32>
    %57 = vector.multi_reduction <add>, %56, %cst_16 [1, 2] : vector<1x8x1xf32> to vector<1xf32>
    %58 = vector.shape_cast %57 : vector<1xf32> to vector<1x1x1xf32>
    %59 = vector.extract %58[0, 0, 0] : f32 from vector<1x1x1xf32>
    %60 = tpu.iota {dimensions = array<i32: 1>} : vector<1x128xi32>
    %c0_i32 = arith.constant 0 : i32
    %61 = vector.broadcast %c0_i32 : i32 to vector<1x128xi32>
    %62 = arith.cmpi eq, %60, %61 : vector<1x128xi32>
    %c1_i32 = arith.constant 1 : i32
    %63 = vector.broadcast %c1_i32 : i32 to vector<1x128xi32>
    %64 = arith.cmpi eq, %60, %63 : vector<1x128xi32>
    %cst_17 = arith.constant 0.000000e+00 : f32
    %65 = vector.broadcast %59 : f32 to vector<1x128xf32>
    %66 = vector.broadcast %cst_17 : f32 to vector<1x128xf32>
    %67 = arith.select %64, %65, %66 : vector<1x128xi1>, vector<1x128xf32>
    %68 = vector.broadcast %45 : f32 to vector<1x128xf32>
    %69 = arith.select %62, %68, %67 : vector<1x128xi1>, vector<1x128xf32>
    %c0_18 = arith.constant 0 : index
    %c0_19 = arith.constant 0 : index
    %70 = vector.load %arg7[%c0_18, %c0_19] : memref<1x128xf32, #tpu.memory_space<vmem>>, vector<1x128xf32>
    tpu.vector_store %arg7[%c0_18, %c0_19], %69 {strides = array<i32>} : memref<1x128xf32, #tpu.memory_space<vmem>>, vector<1x128xf32>,
    %71 = arith.truncf %19 : vector<8x64xf32> to vector<8x64xbf16>
    %c0_20 = arith.constant 0 : index
    %c0_21 = arith.constant 0 : index
    %72 = vector.load %arg3[%c0_20, %c0_21] : memref<64x256xbf16, #tpu.memory_space<vmem>>, vector<64x256xbf16>
    %cst_22 = arith.constant dense<0.000000e+00> : vector<8x256xf32>
    %73 = tpu.matmul %71, %72, %cst_22 {dimension_numbers = #tpu.dot_dimension_numbers<[1], [0], [0], [1], [0, 0, 1, 1], [], []>} : vector<8x64xbf16>, vector<64x256xbf16>, vector<8x256xf32> -> vector<8x256xf32>
    %c0_23 = arith.constant 0 : index
    %c0_24 = arith.constant 0 : index
    %74 = vector.load %arg4[%c0_23, %c0_24] : memref<1x256xf32, #tpu.memory_space<vmem>>, vector<1x256xf32>
    %75 = vector.broadcast %74 : vector<1x256xf32> to vector<8x256xf32>
    %76 = arith.addf %73, %75 : vector<8x256xf32>
    %cst_25 = arith.constant dense<0xFF800000> : vector<8xf32>
    %77 = vector.multi_reduction <maximumf>, %76, %cst_25 [1] : vector<8x256xf32> to vector<8xf32>
    %78 = vector.shape_cast %77 : vector<8xf32> to vector<8x1xf32>
    %79 = vector.broadcast %78 : vector<8x1xf32> to vector<8x256xf32>
    %80 = arith.subf %76, %79 : vector<8x256xf32>
    %81 = math.exp %80 : vector<8x256xf32>
    %cst_26 = arith.constant dense<0.000000e+00> : vector<8xf32>
    %82 = vector.multi_reduction <add>, %81, %cst_26 [1] : vector<8x256xf32> to vector<8xf32>
    %83 = vector.shape_cast %82 : vector<8xf32> to vector<8x1xf32>
    %84 = math.log %83 : vector<8x1xf32>
    %85 = vector.broadcast %84 : vector<8x1xf32> to vector<8x256xf32>
    %86 = arith.subf %80, %85 : vector<8x256xf32>
    %c0_27 = arith.constant 0 : index
    %c0_28 = arith.constant 0 : index
    %87 = vector.load %arg6[%c0_27, %c0_28] : memref<8x256xf32, #tpu.memory_space<vmem>>, vector<8x256xf32>
    tpu.vector_store %arg6[%c0_27, %c0_28], %86 {strides = array<i32>} : memref<8x256xf32, #tpu.memory_space<vmem>>, vector<8x256xf32>,
    return
  }
}

</mosaic_0001>

<llo_original>
// kernel: tpu_custom_call.1
$region0: #{tpu_custom_call.1}
  #allocation0 [shape = 'u32[]', space=smem, size = 0x4, offset = 0x4, fixed_abs, tag = 'smem constant byte address 0x4 - core index']
  #allocation1 [shape = 'u32[144,128]{1,0:T(1,128)}', space=vmem, size = 0x12000, scoped, tag = 'internal scratch']
  %s0 = inlined_call_operand.vmem [shape: f32[8,128], index: 0, kind: input, shape index: {}]
  %s1 = inlined_call_operand.hbm [shape: f32[8,128], index: 1, kind: input, shape index: {}]
  %s2 = inlined_call_operand.vmem [shape: f32[8,2], index: 2, kind: input, shape index: {}]
  %s3 = inlined_call_operand.hbm [shape: bf16[64,256], index: 3, kind: input, shape index: {}]
  %s4 = inlined_call_operand.vmem [shape: f32[1,256], index: 4, kind: input, shape index: {}]
  %s5 = inlined_call_operand.hbm [shape: f32[8,128], index: 5, kind: output, shape index: {0}]
  %s6 = inlined_call_operand.hbm [shape: f32[8,256], index: 6, kind: output, shape index: {1}]
  %s7 = inlined_call_operand.hbm [shape: f32[1,128], index: 7, kind: output, shape index: {2}]
  %8 = xla_tuple %s5, %s6, %s7
  %s9 = sld [smem:[#allocation0]]
  $region54: #{tpu_custom_call.1} parent=0
    _
  %s11 = ssub.s32 1, %s9
  %s12 = scalar_select 0, %s11, %s9
  $region1: #{tpu_custom_call.1} parent=0
    #allocation2 [shape = 'u8[4096]{0}', space=vmem, size = 0x1000, scoped, tag = 'input window, operand 1, single buffered']
    #allocation3 [shape = 's32[1]{0}', space=sflag, size = 0x4, scoped, tag = 'scoped memory for tpu_custom_call.1']
    #allocation4 [shape = 's32[1]{0}', space=sflag, size = 0x4, scoped, tag = 'scoped memory for tpu_custom_call.1']
    #allocation5 [shape = 'u8[32768]{0}', space=vmem, size = 0x8000, scoped, tag = 'input window, operand 3, single buffered']
    #allocation6 [shape = 's32[1]{0}', space=sflag, size = 0x4, scoped, tag = 'scoped memory for tpu_custom_call.1']
    #allocation7 [shape = 'u8[4096]{0}', space=vmem, size = 0x1000, scoped, tag = 'output window, operand 0, single buffered']
    #allocation8 [shape = 'u8[8192]{0}', space=vmem, size = 0x2000, scoped, tag = 'output window, operand 1, single buffered']
    #allocation9 [shape = 's32[1]{0}', space=sflag, size = 0x4, scoped, tag = 'scoped memory for tpu_custom_call.1']
    #allocation10 [shape = 'u8[512]{0}', space=vmem, size = 0x400, scoped, tag = 'output window, operand 2, single buffered']
    %13 = vsyncpa [#allocation3], 0
    %14 = vsyncpa [#allocation6], 0
    %15 = vsyncpa [#allocation4], 0
    %16 = vsyncpa [#allocation9], 0
    // Predicated region
    $region2: #{tpu_custom_call.1} parent=1 // pred_check
      _
    $region3: #{tpu_custom_call.1} parent=1 // pred_check_branch
      %18 = sbr.rel (0) target = $region5
    $region4: #{tpu_custom_call.1} parent=1 // pred_region
      _
    $region5: #{tpu_custom_call.1} parent=1 // pred_fallthru
      _
    // Predicated region
    $region6: #{tpu_custom_call.1} parent=1 // pred_check
      _
    $region7: #{tpu_custom_call.1} parent=1 // pred_check_branch
      %20 = sbr.rel (0) target = $region9
    $region8: #{tpu_custom_call.1} parent=1 // pred_region
      %s22 = ssub.s32 128, 128
      %23 = vsyncadd [#allocation3], %s22
      %s25 = sshll.u32 [#allocation2], 4
      %s26 = int_to_ptr.vmem [resolvable:$true] %s25
      %28 = dma.hbm_to_vmem [thread:$0]  %s1, 128, %s26, [#allocation3]
    $region9: #{tpu_custom_call.1} parent=1 // pred_fallthru
      _
    // Predicated region
    $region10: #{tpu_custom_call.1} parent=1 // pred_check
      _
    $region11: #{tpu_custom_call.1} parent=1 // pred_check_branch
      %30 = sbr.rel (0) target = $region13
    $region12: #{tpu_custom_call.1} parent=1 // pred_region
      _
    $region13: #{tpu_custom_call.1} parent=1 // pred_fallthru
      _
    // Predicated region
    $region14: #{tpu_custom_call.1} parent=1 // pred_check
      _
    $region15: #{tpu_custom_call.1} parent=1 // pred_check_branch
      %32 = sbr.rel (0) target = $region17
    $region16: #{tpu_custom_call.1} parent=1 // pred_region
      %s34 = ssub.s32 1024, 1024
      %35 = vsyncadd [#allocation6], %s34
      %s36 = sshll.u32 [#allocation5], 4
      %s37 = int_to_ptr.vmem [resolvable:$true] %s36
      %42 = dma.hbm_to_vmem [thread:$0]  %s3, 1024, %s37, [#allocation6], 128, 128, 8
    $region17: #{tpu_custom_call.1} parent=1 // pred_fallthru
      _
    // Predicated region
    $region18: #{tpu_custom_call.1} parent=1 // pred_check
      _
    $region19: #{tpu_custom_call.1} parent=1 // pred_check_branch
      %44 = sbr.rel (0) target = $region21
    $region20: #{tpu_custom_call.1} parent=1 // pred_region
      _
    $region21: #{tpu_custom_call.1} parent=1 // pred_fallthru
      _
    // Predicated region
    $region22: #{tpu_custom_call.1} parent=1 // pred_check
      _
    $region23: #{tpu_custom_call.1} parent=1 // pred_check_branch
      %46 = sbr.rel (0) target = $region25
    $region24: #{tpu_custom_call.1} parent=1 // pred_region
      %47 = dma.done [#allocation3], 128
    $region25: #{tpu_custom_call.1} parent=1 // pred_fallthru
      _
    // Predicated region
    $region26: #{tpu_custom_call.1} parent=1 // pred_check
      _
    $region27: #{tpu_custom_call.1} parent=1 // pred_check_branch
      %49 = sbr.rel (0) target = $region29
    $region28: #{tpu_custom_call.1} parent=1 // pred_region
      %50 = dma.done [#allocation6], 1024
    $region29: #{tpu_custom_call.1} parent=1 // pred_fallthru
      _
    %v52 = vld [vmem:[%s0] sm:$0xff]
    %v53 = vld [vmem:[#allocation2] sm:$0xff]
    %v54 = vld [vmem:[%s2] sm:$0xff]
    %v55 = vmul.f32 %v52, 0.5
    %v56 = vmul.f32 %v55, 1.442695
    %v57 = vpow.pop %v56
    %v58 = vmul.f32 %v53, 0.5
    %v59 = vmul.f32 %v58, 1.442695
    %v60 = vpow.pop %v59
    %v61 = vmul.f32 %v57, %v57
    %v62 = vmul.f32 %v60, %v60
    %64 = vset.pattern.permute.xlu0 0
    %65 = vperm.xlu0 %64, %v54
    %v66 = vpop.permute.xlu0 %65
    %v68 = vmul.f32 %v61, %v66
    %70 = vrot.lane.b32.xlu0 %v68, 64
    %v71 = vpop.permute.xlu0 %70
    %v73 = vadd.f32 %v52, %v71
    %74 = vset.pattern.permute.xlu0 1
    %75 = vperm.xlu0 %74, %v54
    %v76 = vpop.permute.xlu0 %75
    %v78 = vmul.f32 %v62, %v76
    %80 = vrot.lane.b32.xlu0 %v78, 64
    %v81 = vpop.permute.xlu0 %80
    %v83 = vadd.f32 %v53, %v81
    %85 = vrot.lane.b32.xlu0 %v83, 64
    %v86 = vpop.permute.xlu0 %85
    %vm88 = vcmask 523264
    %v89 = vsel %vm88, %v73, %v86
    %90 = vst [vmem:[#allocation7] sm:$0xff] %v89
    %v91 = vadd.f32 %v53, 1.0
    %v92 = vmul.f32 %v53, %v53
    %94 = vrot.lane.b32.xlu0 %v92, 64
    %v95 = vpop.permute.xlu0 %94
    %v97 = vsub.f32 %v91, %v95
    %v98 = vsub.f32 %v97, %v62
    %100 = vrot.lane.b32.xlu0 %v98, 64
    %v101 = vpop.permute.xlu0 %100
    %v103 = vsel %vm88, %v101, 0.0
    %104 = vadd.xlane.f32.xlu0 %v103
    %v105 = vpop.xlane.xlu0 %104
    %v106 = vrot.slane %v105, 4
    %v107 = vadd.f32 %v105, %v106
    %v108 = vrot.slane %v107, 2
    %v109 = vadd.f32 %v107, %v108
    %v110 = vrot.slane %v109, 1
    %v111 = vadd.f32 %v109, %v110
    %s112 = vtos %v111
    %s113 = smul.f32 %s112, 0.5
    %v114 = vadd.f32 %v52, 1.0
    %v115 = vmul.f32 %v52, %v52
    %117 = vrot.lane.b32.xlu0 %v115, 64
    %v118 = vpop.permute.xlu0 %117
    %v120 = vsub.f32 %v114, %v118
    %v121 = vsub.f32 %v120, %v61
    %123 = vrot.lane.b32.xlu0 %v121, 64
    %v124 = vpop.permute.xlu0 %123
    %v126 = vsel %vm88, %v124, 0.0
    %127 = vadd.xlane.f32.xlu0 %v126
    %v128 = vpop.xlane.xlu0 %127
    %v129 = vrot.slane %v128, 4
    %v130 = vadd.f32 %v128, %v129
    %v131 = vrot.slane %v130, 2
    %v132 = vadd.f32 %v130, %v131
    %v133 = vrot.slane %v132, 1
    %v134 = vadd.f32 %v132, %v133
    %s135 = vtos %v134
    %s136 = smul.f32 %s135, 0.5
    %s137 = sadd.f32 %s113, %s136
    %v138 = vsub.f32 %v52, %v53
    %v139 = vmul.f32 %v138, %v138
    %v140 = vsel %vm88, %v139, 0.0
    %141 = vadd.xlane.f32.xlu0 %v140
    %v142 = vpop.xlane.xlu0 %141
    %v143 = vsub.f32 %v57, %v60
    %v144 = vmul.f32 %v143, %v143
    %146 = vrot.lane.b32.xlu0 %v144, 64
    %v147 = vpop.permute.xlu0 %146
    %v149 = vsel %vm88, %v147, 0.0
    %150 = vadd.xlane.f32.xlu0 %v149
    %v151 = vpop.xlane.xlu0 %150
    %v152 = vadd.f32 %v142, %v151
    %v153 = vrsqrt.pop %v152
    %v154 = vmul.f32 %v152, %v153
    %vm155 = vcmp.eq.f32.partialorder %v152, inf
    %v156 = vsel %vm155, %v152, %v154
    %vm157 = vcmp.eq.f32.partialorder %v152, 0.0
    %v158 = vand.u32 %v152, 2147483648
    %v159 = vsel %vm157, %v158, %v156
    %vm160 = vcmask 7168
    %v161 = vsel %vm160, %v159, 0.0
    %162 = vadd.xlane.f32.xlu0 %v161
    %v163 = vpop.xlane.xlu0 %162
    %v164 = vrot.slane %v163, 4
    %v165 = vadd.f32 %v163, %v164
    %v166 = vrot.slane %v165, 2
    %v167 = vadd.f32 %v165, %v166
    %v168 = vrot.slane %v167, 1
    %v169 = vadd.f32 %v167, %v168
    %s170 = vtos %v169
    %v171 = vlaneseq
    %v172 = vand.u32 %v171, 127
    %vm173 = vcmp.eq.s32.totalorder %v172, 0
    %vm174 = vcmp.eq.s32.totalorder %v172, 1
    %v175 = vstv %s170
    %v176 = vsel %vm174, %v175, 0.0
    %v177 = vstv %s137
    %v178 = vsel %vm173, %v177, %v176
    %179 = vst [vmem:[#allocation10] sm:$0x1] %v178
    %v180 = vpack.c.bf16 %v73, %v73
    %v181 = vld [vmem:[#allocation5] sm:$0xff]
    %v182 = vld [vmem:[#allocation5 + $0x8] sm:$0xff]
    %v183 = vld [vmem:[#allocation5 + $0x10] sm:$0xff]
    %v184 = vld [vmem:[#allocation5 + $0x18] sm:$0xff]
    %v185 = vld [vmem:[#allocation5 + $0x20] sm:$0xff]
    %v186 = vld [vmem:[#allocation5 + $0x28] sm:$0xff]
    %v187 = vld [vmem:[#allocation5 + $0x30] sm:$0xff]
    %v188 = vld [vmem:[#allocation5 + $0x38] sm:$0xff]
    %v189 = vld [vmem:[%s4] sm:$0x3]
    %v191 = vlaneseq
    %v192 = vshrl.u32 %v191, 7
    %v193 = vsub.s32 0, %v192
    %v194 = vrot.slane %v189, %v193
    %v195 = vlaneseq
    %v196 = vshrl.u32 %v195, 7
    %v197 = vsub.s32 1, %v196
    %v198 = vrot.slane %v189, %v197
    %v209 = vunpack.c.l.b16 %v181
    %v210 = vunpack.c.h.b16 %v181
    %v211 = vunpack.c.l.b16 %v182
    %v212 = vunpack.c.h.b16 %v182
    %v213 = vunpack.c.l.b16 %v183
    %v214 = vunpack.c.h.b16 %v183
    %v215 = vunpack.c.l.b16 %v184
    %v216 = vunpack.c.h.b16 %v184
    %v217 = vunpack.c.l.b16 %v185
    %v218 = vunpack.c.h.b16 %v185
    %v219 = vunpack.c.l.b16 %v186
    %v220 = vunpack.c.h.b16 %v186
    %v221 = vunpack.c.l.b16 %v187
    %v222 = vunpack.c.h.b16 %v187
    %v223 = vunpack.c.l.b16 %v188
    %v224 = vunpack.c.h.b16 %v188
    %v225 = vpack.c.b16 %v211, %v209
    %v226 = vpack.c.b16 %v212, %v210
    %v227 = vpack.c.b16 %v215, %v213
    %v228 = vpack.c.b16 %v216, %v214
    %v229 = vpack.c.b16 %v219, %v217
    %v230 = vpack.c.b16 %v220, %v218
    %v231 = vpack.c.b16 %v223, %v221
    %v232 = vpack.c.b16 %v224, %v222
    %v242 = vsel %vm88, %v180, 0
    %244 = vmatprep.subr.bf16.mxu0 0
    %245 = vmatpush1.bf16.msra.mxu0 0
    %246 = vmatprep.subr.bf16.mxu0 0
    %247 = vmatpush1.bf16.msra.mxu0 0
    %248 = vmatprep.subr.bf16.mxu0 0
    %249 = vmatpush1.bf16.msra.mxu0 0
    %250 = vmatprep.subr.bf16.mxu0 0
    %251 = vmatpush1.bf16.msra.mxu0 0
    %252 = vmatprep.subr.bf16.mxu0 %v232
    %253 = vmatpush1.bf16.msra.mxu0 %v231
    %254 = vmatprep.subr.bf16.mxu0 %v230
    %255 = vmatpush1.bf16.msra.mxu0 %v229
    %256 = vmatprep.subr.bf16.mxu0 %v228
    %257 = vmatpush1.bf16.msra.mxu0 %v227
    %258 = vmatprep.subr.bf16.mxu0 %v226
    %259 = vmatpush1.bf16.msra.mxu0 %v225
    %260 = vmatprep.subr.bf16.mxu0 0
    %261 = vmatpush2.bf16.msra.mxu0 0
    %262 = vmatprep.subr.bf16.mxu0 0
    %263 = vmatpush2.bf16.msra.mxu0 0
    %264 = vmatprep.subr.bf16.mxu0 0
    %265 = vmatpush2.bf16.msra.mxu0 0
    %266 = vmatprep.subr.bf16.mxu0 0
    %267 = vmatpush2.bf16.msra.mxu0 0
    %268 = vmatprep.subr.bf16.mxu0 0
    %269 = vmatpush2.bf16.msra.mxu0 0
    %270 = vmatprep.subr.bf16.mxu0 0
    %271 = vmatpush2.bf16.msra.mxu0 0
    %272 = vmatprep.subr.bf16.mxu0 0
    %273 = vmatpush2.bf16.msra.mxu0 0
    %274 = vmatprep.subr.bf16.mxu0 0
    %275 = vmatpush2.bf16.msra.mxu0 0
    %276 = vmatprep.mubr.bf16.mxu0 0
    %277 = vmatmul.mubr.bf16.gmra.mxu0 %v242
    %v278 = vpop.f32.mrf.mxu0
    %v279 = vadd.f32 %v194, %v278
    %v280 = vpop.f32.mrf.mxu0
    %v281 = vadd.f32 %v198, %v280
    %v282 = vpop.f32.mrf.mxu0
    %v283 = vpop.f32.mrf.mxu0
    %284 = vdwg.mxu0
    %v285 = vmax.f32 %v279, %v281
    %286 = vmax.xlane.f32.xlu0 %v285
    %v287 = vpop.xlane.xlu0 %286
    %v288 = vsub.f32 %v279, %v287
    %v289 = vsub.f32 %v281, %v287
    %v290 = vmul.f32 %v288, 1.442695
    %v291 = vpow.pop %v290
    %v292 = vmul.f32 %v289, 1.442695
    %v293 = vpow.pop %v292
    %v294 = vadd.f32 %v291, %v293
    %295 = vadd.xlane.f32.xlu0 %v294
    %v296 = vpop.xlane.xlu0 %295
    %v297 = vlog2.pop %v296
    %v298 = vmul.f32 %v297, 0.6931472
    %v299 = vsub.f32 %v288, %v298
    %v300 = vsub.f32 %v289, %v298
    %301 = vst [vmem:[#allocation8] sm:$0xff] %v299
    %302 = vst [vmem:[#allocation8 + $0x8] sm:$0xff] %v300
    // Predicated region
    $region30: #{tpu_custom_call.1} parent=1 // pred_check
      _
    $region31: #{tpu_custom_call.1} parent=1 // pred_check_branch
      %304 = sbr.rel (0) target = $region33
    $region32: #{tpu_custom_call.1} parent=1 // pred_region
      %s306 = ssub.s32 128, 128
      %307 = vsyncadd [#allocation4], %s306
      %s309 = sshll.u32 [#allocation7], 4
      %s310 = int_to_ptr.vmem [resolvable:$true] %s309
      %312 = dma.vmem_to_hbm [thread:$0]  %s310, 128, %s5, [#allocation4]
    $region33: #{tpu_custom_call.1} parent=1 // pred_fallthru
      _
    // Predicated region
    $region34: #{tpu_custom_call.1} parent=1 // pred_check
      _
    $region35: #{tpu_custom_call.1} parent=1 // pred_check_branch
      %314 = sbr.rel (0) target = $region37
    $region36: #{tpu_custom_call.1} parent=1 // pred_region
      %s316 = ssub.s32 256, 256
      %317 = vsyncadd [#allocation9], %s316
      %s319 = sshll.u32 [#allocation8], 4
      %s320 = int_to_ptr.vmem [resolvable:$true] %s319
      %322 = dma.vmem_to_hbm [thread:$0]  %s320, 256, %s6, [#allocation9]
    $region37: #{tpu_custom_call.1} parent=1 // pred_fallthru
      _
    // Predicated region
    $region38: #{tpu_custom_call.1} parent=1 // pred_check
      _
    $region39: #{tpu_custom_call.1} parent=1 // pred_check_branch
      %324 = sbr.rel (0) target = $region41
    $region40: #{tpu_custom_call.1} parent=1 // pred_region
      %s326 = ssub.s32 16, 16
      %327 = vsyncadd [#allocation9], %s326
      %s329 = sshll.u32 [#allocation10], 4
      %s330 = int_to_ptr.vmem [resolvable:$true] %s329
      %332 = dma.vmem_to_hbm [thread:$0]  %s330, 16, %s7, [#allocation9]
    $region41: #{tpu_custom_call.1} parent=1 // pred_fallthru
      _
    // Predicated region
    $region42: #{tpu_custom_call.1} parent=1 // pred_check
      _
    $region43: #{tpu_custom_call.1} parent=1 // pred_check_branch
      %334 = sbr.rel (0) target = $region45
    $region44: #{tpu_custom_call.1} parent=1 // pred_region
      %335 = dma.done [#allocation4], 128
    $region45: #{tpu_custom_call.1} parent=1 // pred_fallthru
      _
    // Predicated region
    $region46: #{tpu_custom_call.1} parent=1 // pred_check
      _
    $region47: #{tpu_custom_call.1} parent=1 // pred_check_branch
      %337 = sbr.rel (0) target = $region49
    $region48: #{tpu_custom_call.1} parent=1 // pred_region
      %338 = dma.done [#allocation9], 256
    $region49: #{tpu_custom_call.1} parent=1 // pred_fallthru
      _
    // Predicated region
    $region50: #{tpu_custom_call.1} parent=1 // pred_check
      _
    $region51: #{tpu_custom_call.1} parent=1 // pred_check_branch
      %340 = sbr.rel (0) target = $region53
    $region52: #{tpu_custom_call.1} parent=1 // pred_region
      %341 = dma.done [#allocation9], 16
    $region53: #{tpu_custom_call.1} parent=1 // pred_fallthru
      _
    %342 = vsyncpa [#allocation3], 1
    %343 = vsyncpa [#allocation6], 1
    %344 = vsyncpa [#allocation4], 1
    %345 = vsyncpa [#allocation9], 1

</llo_original>
